<compile_context>
chip_gen: v6e
topology: v6e:2x2x1
jax: 0.10.0
libtpu: 0.0.40
codegen_flags: <defaults>
</compile_context>

<pallas_src>
import functools

import jax
import jax.numpy as jnp
from jax.experimental import pallas as pl
from jax.experimental.pallas import tpu as pltpu

LEAKY_SLOPE = 0.01  # torch.nn.LeakyReLU default negative_slope
LANE = 128


def _leaky_relu(x):
    # Computed in f32 (accumulator dtype) on every chip generation.
    return jnp.where(x > 0, x, LEAKY_SLOPE * x)


def critic_kernel(x_ref,
                  w1_ref, b1_ref,
                  w2_ref, b2_ref,
                  w3_ref, b3_ref,
                  w4t_ref, b4_ref,
                  o_ref):
    """Whole MLP forward for one batch tile, fully in VMEM.

    bf16 MXU matmuls, f32 accumulate, f32 LeakyReLU, bf16 intermediates.
    The final layer is evaluated as w4^T @ h^T so the result is a lane-dense
    (1, tb) row rather than a (tb, 128) slab with one useful column.
    """
    cdt = w1_ref.dtype  # compute dtype (bf16)

    # In-kernel cast: x arrives as f32, VPU cast is free under the MXU.
    x = x_ref[...].astype(cdt)

    h = jnp.dot(x, w1_ref[...], preferred_element_type=jnp.float32) + b1_ref[...]
    h = _leaky_relu(h).astype(cdt)                       # (tb, 256) bf16

    h = jnp.dot(h, w2_ref[...], preferred_element_type=jnp.float32) + b2_ref[...]
    h = _leaky_relu(h).astype(cdt)                       # (tb, 128) bf16

    h = jnp.dot(h, w3_ref[...], preferred_element_type=jnp.float32) + b3_ref[...]
    h = _leaky_relu(h).astype(cdt)                       # (tb, 128) bf16, lanes 64.. are 0

    # Final layer: (8, 128) @ (128, tb) -> (8, tb); only row 0 of w4t is
    # non-zero.  The transpose rides the XLU slot; the store becomes a
    # lane-dense row instead of a 128-lane slab.
    row = jnp.dot(w4t_ref[...], h.T, preferred_element_type=jnp.float32)  # (8, tb)
    out = row[0:1, :] + b4_ref[...]                       # (1, tb) f32
    o_ref[...] = out.reshape(o_ref.shape)                 # (1, 1, tb)


# ----------------------------------------------------------------------------
# Parameter init / preparation
# ----------------------------------------------------------------------------
def init_critic_params(key, obs_dim: int):
    """Deterministic init matching torch.nn.Linear's U(-1/sqrt(fan_in), ...)."""
    dims = [obs_dim, 256, 128, 64, 1]
    params = []
    for i in range(4):
        fan_in, fan_out = dims[i], dims[i + 1]
        key, kw, kb = jax.random.split(key, 3)
        bound = 1.0 / (fan_in ** 0.5)
        w = jax.random.uniform(kw, (fan_in, fan_out), jnp.float32, -bound, bound)
        b = jax.random.uniform(kb, (1, fan_out), jnp.float32, -bound, bound)
        params.append((w, b))
    return params


def _pad_to(a, shape):
    return jnp.pad(a, [(0, s - d) for d, s in zip(a.shape, shape)])


def prepare_params(params, compute_dtype=jnp.bfloat16):
    """Lane-pad narrow layers to 128 and cast weights to the compute dtype.

    Padded weight rows/cols and bias lanes are exactly zero, so padded lanes
    stay identically zero through LeakyReLU -> numerically exact vs. unpadded.
    The last layer is stored transposed (w4t[0, k] = w4[k, 0]) and padded to
    (8, 128).  Biases stay f32 (added to the f32 accumulator).
    """
    (w1, b1), (w2, b2), (w3, b3), (w4, b4) = params
    w3p = _pad_to(w3, (w3.shape[0], LANE))                       # (128, 64) -> (128, 128)
    b3p = _pad_to(b3, (1, LANE))
    w4t = jnp.zeros((8, LANE), jnp.float32).at[0, :w4.shape[0]].set(w4[:, 0])
    cast = lambda w: w.astype(compute_dtype)
    return ((cast(w1), b1), (cast(w2), b2), (cast(w3p), b3p), (cast(w4t), b4))


# ----------------------------------------------------------------------------
# Forward
# ----------------------------------------------------------------------------
@functools.partial(jax.jit, static_argnames=("tb_max",))
def critic_forward(x, prepared_params, tb_max=2048):
    """x: (B, obs_dim) float32; returns (B, 1) float32."""
    B, D = x.shape
    (w1, b1), (w2, b2), (w3, b3), (w4t, b4) = prepared_params

    # Tile selection: whole batch for small B; otherwise at least 2 tiles so
    # the "parallel" grid axis shards across v7x's two TensorCores, capped at
    # tb_max rows (multiple of 16) per tile.
    if B <= 256:
        tb = B
    else:
        half = -(-B // 2)              # ceil(B / 2)
        half = -(-half // 16) * 16     # round up to a multiple of 16
        tb = min((tb_max // 16) * 16, half)

    n_tiles = pl.cdiv(B, tb)
    B_pad = n_tiles * tb

    x_in = x if B_pad == B else jnp.pad(x, ((0, B_pad - B), (0, 0)))

    def resident(shape):
        # Weights / biases resident across the whole grid (block idx fixed).
        return pl.BlockSpec(shape, lambda i: (0, 0))

    weight_bytes = 2 * (D * 256 + 256 * 128 + 128 * 128 + 8 * 128)  # bf16
    bias_bytes = 4 * (256 + 128 + 128 + 1)                          # f32
    flops = 2 * B_pad * (D * 256 + 256 * 128 + 128 * 128 + 128 * 8)
    bytes_accessed = B_pad * D * 4 + B_pad * 4 + weight_bytes + bias_bytes

    out = pl.pallas_call(
        critic_kernel,
        out_shape=jax.ShapeDtypeStruct((n_tiles, 1, tb), jnp.float32),
        grid_spec=pltpu.PrefetchScalarGridSpec(
            num_scalar_prefetch=0,
            grid=(n_tiles,),
            in_specs=[
                pl.BlockSpec((tb, D), lambda i: (i, 0)),   # x batch tile (f32)
                resident(w1.shape), resident(b1.shape),
                resident(w2.shape), resident(b2.shape),
                resident(w3.shape), resident(b3.shape),
                resident(w4t.shape), resident(b4.shape),
            ],
            out_specs=pl.BlockSpec((1, 1, tb), lambda i: (i, 0, 0)),
        ),
        compiler_params=pltpu.CompilerParams(
            dimension_semantics=("parallel",),
            vmem_limit_bytes=32 * 1024 * 1024,
        ),
        cost_estimate=pl.CostEstimate(
            flops=int(flops), transcendentals=0, bytes_accessed=int(bytes_accessed)),
    )(x_in, w1, b1, w2, b2, w3, b3, w4t, b4)

    # Metadata-only reshape; tiny slice only when the batch was padded.
    out = out.reshape(B_pad)
    if B_pad != B:
        out = out[:B]
    return out.reshape(B, 1)


# ----------------------------------------------------------------------------
# References
# ----------------------------------------------------------------------------
def critic_reference_f32(x, params):
    h = x
    for i, (w, b) in enumerate(params):
        h = h @ w + b
        if i < 3:
            h = jnp.where(h > 0, h, LEAKY_SLOPE * h)
    return h


def critic_reference_mixed(x, params, compute_dtype=jnp.bfloat16):
    """Mirrors the kernel numerics: bf16 operands, f32 accumulate, f32 relu."""
    h = x
    for i, (w, b) in enumerate(params):
        h = jnp.dot(h.astype(compute_dtype), w.astype(compute_dtype),
                    preferred_element_type=jnp.float32) + b
        if i < 3:
            h = jnp.where(h > 0, h, LEAKY_SLOPE * h)
    return h


if __name__ == "__main__":
    key = jax.random.PRNGKey(0)
    obs_dim = 8

    k_params, k_x1, k_x2 = jax.random.split(key, 3)
    params = init_critic_params(k_params, obs_dim)
    prepared = prepare_params(params)

    # Small batch: single tile, grid=(1,).
    x_small = jax.random.normal(k_x1, (16, obs_dim), dtype=jnp.float32)
    out_small = jax.block_until_ready(critic_forward(x_small, prepared))
    assert out_small.shape == (16, 1)

    ref_mixed = critic_reference_mixed(x_small, params)
    assert jnp.allclose(out_small, ref_mixed, atol=2e-3, rtol=2e-3), \
        "mismatch vs mixed-precision reference (small batch)"
    ref_f32 = critic_reference_f32(x_small, params)
    assert jnp.allclose(out_small, ref_f32, atol=0.1, rtol=0.1), \
        "mismatch vs f32 reference (small batch)"

    # Larger batch: exercises the multi-tile + batch-padding path (2 tiles).
    x_big = jax.random.normal(k_x2, (400, obs_dim), dtype=jnp.float32)
    out_big = jax.block_until_ready(critic_forward(x_big, prepared))
    assert out_big.shape == (400, 1)
    ref_big = critic_reference_mixed(x_big, params)
    assert jnp.allclose(out_big, ref_big, atol=2e-3, rtol=2e-3), \
        "mismatch vs mixed-precision reference (multi-tile batch)"

    print("KERNEL_OK")
</pallas_src>

<mosaic_0001>
module attributes {stable_mosaic.version = 11 : i64} {
  func.func @critic_kernel(%arg0: i32, %arg1: memref<16x8xf32, #tpu.memory_space<vmem>>, %arg2: memref<8x256xbf16, #tpu.memory_space<vmem>>, %arg3: memref<1x256xf32, #tpu.memory_space<vmem>>, %arg4: memref<256x128xbf16, #tpu.memory_space<vmem>>, %arg5: memref<1x128xf32, #tpu.memory_space<vmem>>, %arg6: memref<128x128xbf16, #tpu.memory_space<vmem>>, %arg7: memref<1x128xf32, #tpu.memory_space<vmem>>, %arg8: memref<8x128xbf16, #tpu.memory_space<vmem>>, %arg9: memref<1x1xf32, #tpu.memory_space<vmem>>, %arg10: memref<1x1x16xf32, #tpu.memory_space<vmem>>) attributes {dimension_semantics = [#tpu.dimension_semantics<parallel>], iteration_bounds = array<i64: 1>, scalar_prefetch = 0 : i64, scratch_operands = 0 : i64, tpu.core_type = #tpu.core_type<tc>, window_params = [{transform_indices = @transform_0, window_bounds = array<i64: 16, 8>}, {pipeline_mode = #tpu.pipeline_mode<synchronous>, transform_indices = @transform_1, window_bounds = array<i64: 8, 256>}, {pipeline_mode = #tpu.pipeline_mode<synchronous>, transform_indices = @transform_2, window_bounds = array<i64: 1, 256>}, {pipeline_mode = #tpu.pipeline_mode<synchronous>, transform_indices = @transform_3, window_bounds = array<i64: 256, 128>}, {pipeline_mode = #tpu.pipeline_mode<synchronous>, transform_indices = @transform_4, window_bounds = array<i64: 1, 128>}, {pipeline_mode = #tpu.pipeline_mode<synchronous>, transform_indices = @transform_5, window_bounds = array<i64: 128, 128>}, {pipeline_mode = #tpu.pipeline_mode<synchronous>, transform_indices = @transform_6, window_bounds = array<i64: 1, 128>}, {pipeline_mode = #tpu.pipeline_mode<synchronous>, transform_indices = @transform_7, window_bounds = array<i64: 8, 128>}, {pipeline_mode = #tpu.pipeline_mode<synchronous>, transform_indices = @transform_8, window_bounds = array<i64: 1, 1>}, {transform_indices = @transform_9, window_bounds = array<i64: 1, 1, 16>}]} {
    %c0 = arith.constant 0 : index
    %c0_0 = arith.constant 0 : index
    %0 = vector.load %arg1[%c0, %c0_0] : memref<16x8xf32, #tpu.memory_space<vmem>>, vector<16x8xf32>
    %1 = arith.truncf %0 : vector<16x8xf32> to vector<16x8xbf16>
    %c0_1 = arith.constant 0 : index
    %c0_2 = arith.constant 0 : index
    %2 = vector.load %arg2[%c0_1, %c0_2] : memref<8x256xbf16, #tpu.memory_space<vmem>>, vector<8x256xbf16>
    %cst = arith.constant dense<0.000000e+00> : vector<16x256xf32>
    %3 = tpu.matmul %1, %2, %cst {dimension_numbers = #tpu.dot_dimension_numbers<[1], [0], [0], [1], [0, 0, 1, 1], [], []>} : vector<16x8xbf16>, vector<8x256xbf16>, vector<16x256xf32> -> vector<16x256xf32>
    %c0_3 = arith.constant 0 : index
    %c0_4 = arith.constant 0 : index
    %4 = vector.load %arg3[%c0_3, %c0_4] : memref<1x256xf32, #tpu.memory_space<vmem>>, vector<1x256xf32>
    %5 = vector.broadcast %4 : vector<1x256xf32> to vector<16x256xf32>
    %6 = arith.addf %3, %5 : vector<16x256xf32>
    %cst_5 = arith.constant 0.000000e+00 : f32
    %7 = vector.broadcast %cst_5 : f32 to vector<16x256xf32>
    %8 = arith.cmpf ogt, %6, %7 : vector<16x256xf32>
    %cst_6 = arith.constant 0.00999999977 : f32
    %9 = vector.broadcast %cst_6 : f32 to vector<16x256xf32>
    %10 = arith.mulf %9, %6 : vector<16x256xf32>
    %11 = arith.select %8, %6, %10 : vector<16x256xi1>, vector<16x256xf32>
    %12 = arith.truncf %11 : vector<16x256xf32> to vector<16x256xbf16>
    %c0_7 = arith.constant 0 : index
    %c0_8 = arith.constant 0 : index
    %13 = vector.load %arg4[%c0_7, %c0_8] : memref<256x128xbf16, #tpu.memory_space<vmem>>, vector<256x128xbf16>
    %cst_9 = arith.constant dense<0.000000e+00> : vector<16x128xf32>
    %14 = tpu.matmul %12, %13, %cst_9 {dimension_numbers = #tpu.dot_dimension_numbers<[1], [0], [0], [1], [0, 0, 1, 1], [], []>} : vector<16x256xbf16>, vector<256x128xbf16>, vector<16x128xf32> -> vector<16x128xf32>
    %c0_10 = arith.constant 0 : index
    %c0_11 = arith.constant 0 : index
    %15 = vector.load %arg5[%c0_10, %c0_11] : memref<1x128xf32, #tpu.memory_space<vmem>>, vector<1x128xf32>
    %16 = vector.broadcast %15 : vector<1x128xf32> to vector<16x128xf32>
    %17 = arith.addf %14, %16 : vector<16x128xf32>
    %cst_12 = arith.constant 0.000000e+00 : f32
    %18 = vector.broadcast %cst_12 : f32 to vector<16x128xf32>
    %19 = arith.cmpf ogt, %17, %18 : vector<16x128xf32>
    %cst_13 = arith.constant 0.00999999977 : f32
    %20 = vector.broadcast %cst_13 : f32 to vector<16x128xf32>
    %21 = arith.mulf %20, %17 : vector<16x128xf32>
    %22 = arith.select %19, %17, %21 : vector<16x128xi1>, vector<16x128xf32>
    %23 = arith.truncf %22 : vector<16x128xf32> to vector<16x128xbf16>
    %c0_14 = arith.constant 0 : index
    %c0_15 = arith.constant 0 : index
    %24 = vector.load %arg6[%c0_14, %c0_15] : memref<128x128xbf16, #tpu.memory_space<vmem>>, vector<128x128xbf16>
    %cst_16 = arith.constant dense<0.000000e+00> : vector<16x128xf32>
    %25 = tpu.matmul %23, %24, %cst_16 {dimension_numbers = #tpu.dot_dimension_numbers<[1], [0], [0], [1], [0, 0, 1, 1], [], []>} : vector<16x128xbf16>, vector<128x128xbf16>, vector<16x128xf32> -> vector<16x128xf32>
    %c0_17 = arith.constant 0 : index
    %c0_18 = arith.constant 0 : index
    %26 = vector.load %arg7[%c0_17, %c0_18] : memref<1x128xf32, #tpu.memory_space<vmem>>, vector<1x128xf32>
    %27 = vector.broadcast %26 : vector<1x128xf32> to vector<16x128xf32>
    %28 = arith.addf %25, %27 : vector<16x128xf32>
    %cst_19 = arith.constant 0.000000e+00 : f32
    %29 = vector.broadcast %cst_19 : f32 to vector<16x128xf32>
    %30 = arith.cmpf ogt, %28, %29 : vector<16x128xf32>
    %cst_20 = arith.constant 0.00999999977 : f32
    %31 = vector.broadcast %cst_20 : f32 to vector<16x128xf32>
    %32 = arith.mulf %31, %28 : vector<16x128xf32>
    %33 = arith.select %30, %28, %32 : vector<16x128xi1>, vector<16x128xf32>
    %34 = arith.truncf %33 : vector<16x128xf32> to vector<16x128xbf16>
    %c0_21 = arith.constant 0 : index
    %c0_22 = arith.constant 0 : index
    %35 = vector.load %arg8[%c0_21, %c0_22] : memref<8x128xbf16, #tpu.memory_space<vmem>>, vector<8x128xbf16>
    %36 = tpu.transpose %34, [1, 0] : vector<16x128xbf16> -> vector<128x16xbf16>
    %cst_23 = arith.constant dense<0.000000e+00> : vector<8x16xf32>
    %37 = tpu.matmul %35, %36, %cst_23 {dimension_numbers = #tpu.dot_dimension_numbers<[1], [0], [0], [1], [0, 0, 1, 1], [], []>} : vector<8x128xbf16>, vector<128x16xbf16>, vector<8x16xf32> -> vector<8x16xf32>
    %38 = vector.extract_strided_slice %37 {offsets = [0, 0], sizes = [1, 16], strides = [1, 1]} : vector<8x16xf32> to vector<1x16xf32>
    %c0_24 = arith.constant 0 : index
    %c0_25 = arith.constant 0 : index
    %39 = vector.load %arg9[%c0_24, %c0_25] : memref<1x1xf32, #tpu.memory_space<vmem>>, vector<1x1xf32>
    %40 = vector.broadcast %39 : vector<1x1xf32> to vector<1x16xf32>
    %41 = arith.addf %38, %40 : vector<1x16xf32>
    %42 = vector.shape_cast %41 : vector<1x16xf32> to vector<1x1x16xf32>
    %c0_26 = arith.constant 0 : index
    %c0_27 = arith.constant 0 : index
    %c0_28 = arith.constant 0 : index
    %43 = vector.load %arg10[%c0_26, %c0_27, %c0_28] : memref<1x1x16xf32, #tpu.memory_space<vmem>>, vector<1x1x16xf32>
    tpu.vector_store %arg10[%c0_26, %c0_27, %c0_28], %42 {strides = array<i32>} : memref<1x1x16xf32, #tpu.memory_space<vmem>>, vector<1x1x16xf32>,
    return
  }
  func.func @transform_0(%arg0: i32) -> (i32, i32) {
    %c0_i32 = arith.constant 0 : i32
    %c0_i32_0 = arith.constant 0 : i32
    return %arg0, %c0_i32 : i32, i32
  }
  func.func @transform_1(%arg0: i32) -> (i32, i32) {
    %c0_i32 = arith.constant 0 : i32
    %c0_i32_0 = arith.constant 0 : i32
    %c0_i32_1 = arith.constant 0 : i32
    return %c0_i32, %c0_i32_0 : i32, i32
  }
  func.func @transform_2(%arg0: i32) -> (i32, i32) {
    %c0_i32 = arith.constant 0 : i32
    %c0_i32_0 = arith.constant 0 : i32
    %c0_i32_1 = arith.constant 0 : i32
    return %c0_i32, %c0_i32_0 : i32, i32
  }
  func.func @transform_3(%arg0: i32) -> (i32, i32) {
    %c0_i32 = arith.constant 0 : i32
    %c0_i32_0 = arith.constant 0 : i32
    %c0_i32_1 = arith.constant 0 : i32
    return %c0_i32, %c0_i32_0 : i32, i32
  }
  func.func @transform_4(%arg0: i32) -> (i32, i32) {
    %c0_i32 = arith.constant 0 : i32
    %c0_i32_0 = arith.constant 0 : i32
    %c0_i32_1 = arith.constant 0 : i32
    return %c0_i32, %c0_i32_0 : i32, i32
  }
  func.func @transform_5(%arg0: i32) -> (i32, i32) {
    %c0_i32 = arith.constant 0 : i32
    %c0_i32_0 = arith.constant 0 : i32
    %c0_i32_1 = arith.constant 0 : i32
    return %c0_i32, %c0_i32_0 : i32, i32
  }
  func.func @transform_6(%arg0: i32) -> (i32, i32) {
    %c0_i32 = arith.constant 0 : i32
    %c0_i32_0 = arith.constant 0 : i32
    %c0_i32_1 = arith.constant 0 : i32
    return %c0_i32, %c0_i32_0 : i32, i32
  }
  func.func @transform_7(%arg0: i32) -> (i32, i32) {
    %c0_i32 = arith.constant 0 : i32
    %c0_i32_0 = arith.constant 0 : i32
    %c0_i32_1 = arith.constant 0 : i32
    return %c0_i32, %c0_i32_0 : i32, i32
  }
  func.func @transform_8(%arg0: i32) -> (i32, i32) {
    %c0_i32 = arith.constant 0 : i32
    %c0_i32_0 = arith.constant 0 : i32
    %c0_i32_1 = arith.constant 0 : i32
    return %c0_i32, %c0_i32_0 : i32, i32
  }
  func.func @transform_9(%arg0: i32) -> (i32, i32, i32) {
    %c0_i32 = arith.constant 0 : i32
    %c0_i32_0 = arith.constant 0 : i32
    %c0_i32_1 = arith.constant 0 : i32
    return %arg0, %c0_i32, %c0_i32_0 : i32, i32, i32
  }
}

</mosaic_0001>

<llo_original>
// kernel: critic_forward.1
$region0: #{critic_forward.1}
  #allocation0 [shape = 'u32[]', space=smem, size = 0x4, offset = 0x4, fixed_abs, tag = 'smem constant byte address 0x4 - core index']
  #allocation1 [shape = 'u32[144,128]{1,0:T(1,128)}', space=vmem, size = 0x12000, scoped, tag = 'internal scratch']
  #allocation2 [shape = 'f32[1,1]{1,0:T(1,128)S(1)}', space=vmem, size = 0x200, scoped, tag = 'scoped memory for critic_forward.1']
  %s0 = inlined_call_operand.vmem [shape: f32[16,8], index: 0, kind: input, shape index: {}]
  %s1 = inlined_call_operand.vmem [shape: bf16[8,256], index: 1, kind: input, shape index: {}]
  %s2 = inlined_call_operand.vmem [shape: f32[1,256], index: 2, kind: input, shape index: {}]
  %s3 = inlined_call_operand.hbm [shape: bf16[256,128], index: 3, kind: input, shape index: {}]
  %s4 = inlined_call_operand.vmem [shape: f32[1,128], index: 4, kind: input, shape index: {}]
  %s5 = inlined_call_operand.hbm [shape: bf16[128,128], index: 5, kind: input, shape index: {}]
  %s6 = inlined_call_operand.vmem [shape: f32[1,128], index: 6, kind: input, shape index: {}]
  %s7 = inlined_call_operand.vmem [shape: bf16[8,128], index: 7, kind: input, shape index: {}]
  %s8 = inlined_call_operand.<no memory space> [shape: f32[1,1], index: 8, kind: input, shape index: {}]
  %s9 = inlined_call_operand.hbm [shape: f32[1,1,16], index: 9, kind: output, shape index: {}]
  %s10 = sld [smem:[#allocation0]]
  $region54: #{critic_forward.1} parent=0
    _
  %s12 = ssub.s32 1, %s10
  %s13 = scalar_select 0, %s12, %s10
  %v14 = vstv %s8
  %15 = vst [vmem:[#allocation2] sm:$0x1] %v14
  $region1: #{critic_forward.1} parent=0
    #allocation3 [shape = 'u8[65536]{0}', space=vmem, size = 0x10000, scoped, tag = 'input window, operand 3, single buffered']
    #allocation4 [shape = 's32[1]{0}', space=sflag, size = 0x4, scoped, tag = 'scoped memory for critic_forward.1']
    #allocation5 [shape = 's32[1]{0}', space=sflag, size = 0x4, scoped, tag = 'scoped memory for critic_forward.1']
    #allocation6 [shape = 'u8[32768]{0}', space=vmem, size = 0x8000, scoped, tag = 'input window, operand 5, single buffered']
    #allocation7 [shape = 's32[1]{0}', space=sflag, size = 0x4, scoped, tag = 'scoped memory for critic_forward.1']
    #allocation8 [shape = 'u8[512]{0}', space=vmem, size = 0x400, scoped, tag = 'output window, operand 0, single buffered']
    %16 = vsyncpa [#allocation4], 0
    %17 = vsyncpa [#allocation7], 0
    %18 = vsyncpa [#allocation5], 0
    // Predicated region
    $region2: #{critic_forward.1} parent=1 // pred_check
      _
    $region3: #{critic_forward.1} parent=1 // pred_check_branch
      %20 = sbr.rel (0) target = $region5
    $region4: #{critic_forward.1} parent=1 // pred_region
      _
    $region5: #{critic_forward.1} parent=1 // pred_fallthru
      _
    // Predicated region
    $region6: #{critic_forward.1} parent=1 // pred_check
      _
    $region7: #{critic_forward.1} parent=1 // pred_check_branch
      %22 = sbr.rel (0) target = $region9
    $region8: #{critic_forward.1} parent=1 // pred_region
      _
    $region9: #{critic_forward.1} parent=1 // pred_fallthru
      _
    // Predicated region
    $region10: #{critic_forward.1} parent=1 // pred_check
      _
    $region11: #{critic_forward.1} parent=1 // pred_check_branch
      %24 = sbr.rel (0) target = $region13
    $region12: #{critic_forward.1} parent=1 // pred_region
      _
    $region13: #{critic_forward.1} parent=1 // pred_fallthru
      _
    // Predicated region
    $region14: #{critic_forward.1} parent=1 // pred_check
      _
    $region15: #{critic_forward.1} parent=1 // pred_check_branch
      %26 = sbr.rel (0) target = $region17
    $region16: #{critic_forward.1} parent=1 // pred_region
      %s28 = ssub.s32 2048, 2048
      %29 = vsyncadd [#allocation4], %s28
      %s30 = sshll.u32 [#allocation3], 4
      %s31 = int_to_ptr.vmem [resolvable:$true] %s30
      %36 = dma.hbm_to_vmem [thread:$0]  %s3, 2048, %s31, [#allocation4], 64, 64, 4
    $region17: #{critic_forward.1} parent=1 // pred_fallthru
      _
    // Predicated region
    $region18: #{critic_forward.1} parent=1 // pred_check
      _
    $region19: #{critic_forward.1} parent=1 // pred_check_branch
      %38 = sbr.rel (0) target = $region21
    $region20: #{critic_forward.1} parent=1 // pred_region
      _
    $region21: #{critic_forward.1} parent=1 // pred_fallthru
      _
    // Predicated region
    $region22: #{critic_forward.1} parent=1 // pred_check
      _
    $region23: #{critic_forward.1} parent=1 // pred_check_branch
      %40 = sbr.rel (0) target = $region25
    $region24: #{critic_forward.1} parent=1 // pred_region
      %s42 = ssub.s32 1024, 1024
      %43 = vsyncadd [#allocation7], %s42
      %s44 = sshll.u32 [#allocation6], 4
      %s45 = int_to_ptr.vmem [resolvable:$true] %s44
      %50 = dma.hbm_to_vmem [thread:$0]  %s5, 1024, %s45, [#allocation7], 64, 64, 4
    $region25: #{critic_forward.1} parent=1 // pred_fallthru
      _
    // Predicated region
    $region26: #{critic_forward.1} parent=1 // pred_check
      _
    $region27: #{critic_forward.1} parent=1 // pred_check_branch
      %52 = sbr.rel (0) target = $region29
    $region28: #{critic_forward.1} parent=1 // pred_region
      _
    $region29: #{critic_forward.1} parent=1 // pred_fallthru
      _
    // Predicated region
    $region30: #{critic_forward.1} parent=1 // pred_check
      _
    $region31: #{critic_forward.1} parent=1 // pred_check_branch
      %54 = sbr.rel (0) target = $region33
    $region32: #{critic_forward.1} parent=1 // pred_region
      _
    $region33: #{critic_forward.1} parent=1 // pred_fallthru
      _
    // Predicated region
    $region34: #{critic_forward.1} parent=1 // pred_check
      _
    $region35: #{critic_forward.1} parent=1 // pred_check_branch
      %56 = sbr.rel (0) target = $region37
    $region36: #{critic_forward.1} parent=1 // pred_region
      _
    $region37: #{critic_forward.1} parent=1 // pred_fallthru
      _
    // Predicated region
    $region38: #{critic_forward.1} parent=1 // pred_check
      _
    $region39: #{critic_forward.1} parent=1 // pred_check_branch
      %58 = sbr.rel (0) target = $region41
    $region40: #{critic_forward.1} parent=1 // pred_region
      %59 = dma.done [#allocation4], 2048
    $region41: #{critic_forward.1} parent=1 // pred_fallthru
      _
    // Predicated region
    $region42: #{critic_forward.1} parent=1 // pred_check
      _
    $region43: #{critic_forward.1} parent=1 // pred_check_branch
      %61 = sbr.rel (0) target = $region45
    $region44: #{critic_forward.1} parent=1 // pred_region
      %62 = dma.done [#allocation7], 1024
    $region45: #{critic_forward.1} parent=1 // pred_fallthru
      _
    %v64 = vld [vmem:[%s0] sm:$0xff]
    %v65 = vld [vmem:[%s0 + $0x8] sm:$0xff]
    %v66 = vpack.c.bf16 %v65, %v64
    %v67 = vld [vmem:[%s1] sm:$0xff]
    %v68 = vld [vmem:[%s2] sm:$0x3]
    %v70 = vlaneseq
    %v71 = vshrl.u32 %v70, 7
    %v72 = vsub.s32 0, %v71
    %v73 = vrot.slane %v68, %v72
    %v74 = vlaneseq
    %v75 = vshrl.u32 %v74, 7
    %v76 = vsub.s32 1, %v75
    %v77 = vrot.slane %v68, %v76
    %v81 = vunpack.c.l.b16 %v67
    %v82 = vunpack.c.h.b16 %v67
    %v83 = vpack.c.b16 %v81, %v81
    %v84 = vpack.c.b16 %v82, %v82
    %vm85 = vcmask 64512
    %v87 = vsel %vm85, %v66, 0
    %vm89 = vcmask 1043456
    %v91 = vsel %vm89, %v83, 0
    %v94 = vsel %vm89, %v84, 0
    %96 = vmatprep.subr.bf16.mxu0 0
    %97 = vmatpush1.bf16.msra.mxu0 0
    %98 = vmatprep.subr.bf16.mxu0 0
    %99 = vmatpush1.bf16.msra.mxu0 0
    %100 = vmatprep.subr.bf16.mxu0 0
    %101 = vmatpush1.bf16.msra.mxu0 0
    %102 = vmatprep.subr.bf16.mxu0 0
    %103 = vmatpush1.bf16.msra.mxu0 0
    %104 = vmatprep.subr.bf16.mxu0 0
    %105 = vmatpush1.bf16.msra.mxu0 0
    %106 = vmatprep.subr.bf16.mxu0 0
    %107 = vmatpush1.bf16.msra.mxu0 0
    %108 = vmatprep.subr.bf16.mxu0 0
    %109 = vmatpush1.bf16.msra.mxu0 0
    %110 = vmatprep.subr.bf16.mxu0 %v94
    %111 = vmatpush1.bf16.msra.mxu0 %v91
    %112 = vmatprep.subr.bf16.mxu0 0
    %113 = vmatpush2.bf16.msra.mxu0 0
    %114 = vmatprep.subr.bf16.mxu0 0
    %115 = vmatpush2.bf16.msra.mxu0 0
    %116 = vmatprep.subr.bf16.mxu0 0
    %117 = vmatpush2.bf16.msra.mxu0 0
    %118 = vmatprep.subr.bf16.mxu0 0
    %119 = vmatpush2.bf16.msra.mxu0 0
    %120 = vmatprep.subr.bf16.mxu0 0
    %121 = vmatpush2.bf16.msra.mxu0 0
    %122 = vmatprep.subr.bf16.mxu0 0
    %123 = vmatpush2.bf16.msra.mxu0 0
    %124 = vmatprep.subr.bf16.mxu0 0
    %125 = vmatpush2.bf16.msra.mxu0 0
    %126 = vmatprep.subr.bf16.mxu0 0
    %127 = vmatpush2.bf16.msra.mxu0 0
    %128 = vmatprep.mubr.bf16.mxu0 0
    %129 = vmatmul.mubr.bf16.gmra.mxu0 %v87
    %v130 = vpop.f32.mrf.mxu0
    %v131 = vadd.f32 %v73, %v130
    %v132 = vpop.f32.mrf.mxu0
    %v133 = vadd.f32 %v77, %v132
    %v134 = vpop.f32.mrf.mxu0
    %v135 = vadd.f32 %v73, %v134
    %v136 = vpop.f32.mrf.mxu0
    %v137 = vadd.f32 %v77, %v136
    %138 = vdwg.mxu0
    %vm139 = vcmp.gt.f32.partialorder %v131, 0.0
    %vm140 = vcmp.gt.f32.partialorder %v133, 0.0
    %vm141 = vcmp.gt.f32.partialorder %v135, 0.0
    %vm142 = vcmp.gt.f32.partialorder %v137, 0.0
    %v143 = vmul.f32 %v131, 0.01
    %v144 = vmul.f32 %v133, 0.01
    %v145 = vmul.f32 %v135, 0.01
    %v146 = vmul.f32 %v137, 0.01
    %v147 = vsel %vm139, %v131, %v143
    %v148 = vsel %vm140, %v133, %v144
    %v149 = vsel %vm141, %v135, %v145
    %v150 = vsel %vm142, %v137, %v146
    %v151 = vpack.c.bf16 %v149, %v147
    %v152 = vpack.c.bf16 %v150, %v148
    %v153 = vld [vmem:[#allocation3] sm:$0xf]
    %v154 = vld [vmem:[#allocation3 + $0x4] sm:$0xf]
    %v155 = vld [vmem:[#allocation3 + $0x8] sm:$0xf]
    %v156 = vld [vmem:[#allocation3 + $0xc] sm:$0xf]
    %v157 = vld [vmem:[#allocation3 + $0x10] sm:$0xf]
    %v158 = vld [vmem:[#allocation3 + $0x14] sm:$0xf]
    %v159 = vld [vmem:[#allocation3 + $0x18] sm:$0xf]
    %v160 = vld [vmem:[#allocation3 + $0x1c] sm:$0xf]
    %v161 = vld [vmem:[#allocation3 + $0x20] sm:$0xf]
    %v162 = vld [vmem:[#allocation3 + $0x24] sm:$0xf]
    %v163 = vld [vmem:[#allocation3 + $0x28] sm:$0xf]
    %v164 = vld [vmem:[#allocation3 + $0x2c] sm:$0xf]
    %v165 = vld [vmem:[#allocation3 + $0x30] sm:$0xf]
    %v166 = vld [vmem:[#allocation3 + $0x34] sm:$0xf]
    %v167 = vld [vmem:[#allocation3 + $0x38] sm:$0xf]
    %v168 = vld [vmem:[#allocation3 + $0x3c] sm:$0xf]
    %v169 = vld [vmem:[#allocation3 + $0x40] sm:$0xf]
    %v170 = vld [vmem:[#allocation3 + $0x44] sm:$0xf]
    %v171 = vld [vmem:[#allocation3 + $0x48] sm:$0xf]
    %v172 = vld [vmem:[#allocation3 + $0x4c] sm:$0xf]
    %v173 = vld [vmem:[#allocation3 + $0x50] sm:$0xf]
    %v174 = vld [vmem:[#allocation3 + $0x54] sm:$0xf]
    %v175 = vld [vmem:[#allocation3 + $0x58] sm:$0xf]
    %v176 = vld [vmem:[#allocation3 + $0x5c] sm:$0xf]
    %v177 = vld [vmem:[#allocation3 + $0x60] sm:$0xf]
    %v178 = vld [vmem:[#allocation3 + $0x64] sm:$0xf]
    %v179 = vld [vmem:[#allocation3 + $0x68] sm:$0xf]
    %v180 = vld [vmem:[#allocation3 + $0x6c] sm:$0xf]
    %v181 = vld [vmem:[#allocation3 + $0x70] sm:$0xf]
    %v182 = vld [vmem:[#allocation3 + $0x74] sm:$0xf]
    %v183 = vld [vmem:[#allocation3 + $0x78] sm:$0xf]
    %v184 = vld [vmem:[#allocation3 + $0x7c] sm:$0xf]
    %v185 = vld [vmem:[%s4] sm:$0x1]
    %v187 = vlaneseq
    %v188 = vshrl.u32 %v187, 7
    %v189 = vsub.s32 0, %v188
    %v190 = vrot.slane %v185, %v189
    %v224 = vunpack.c.l.b16 %v153
    %v225 = vunpack.c.l.b16 %v154
    %v226 = vunpack.c.l.b16 %v155
    %v227 = vunpack.c.l.b16 %v156
    %v228 = vunpack.c.l.b16 %v157
    %v229 = vunpack.c.l.b16 %v158
    %v230 = vunpack.c.l.b16 %v159
    %v231 = vunpack.c.l.b16 %v160
    %v232 = vunpack.c.l.b16 %v161
    %v233 = vunpack.c.l.b16 %v162
    %v234 = vunpack.c.l.b16 %v163
    %v235 = vunpack.c.l.b16 %v164
    %v236 = vunpack.c.l.b16 %v165
    %v237 = vunpack.c.l.b16 %v166
    %v238 = vunpack.c.l.b16 %v167
    %v239 = vunpack.c.l.b16 %v168
    %v240 = vunpack.c.l.b16 %v169
    %v241 = vunpack.c.l.b16 %v170
    %v242 = vunpack.c.l.b16 %v171
    %v243 = vunpack.c.l.b16 %v172
    %v244 = vunpack.c.l.b16 %v173
    %v245 = vunpack.c.l.b16 %v174
    %v246 = vunpack.c.l.b16 %v175
    %v247 = vunpack.c.l.b16 %v176
    %v248 = vunpack.c.l.b16 %v177
    %v249 = vunpack.c.l.b16 %v178
    %v250 = vunpack.c.l.b16 %v179
    %v251 = vunpack.c.l.b16 %v180
    %v252 = vunpack.c.l.b16 %v181
    %v253 = vunpack.c.l.b16 %v182
    %v254 = vunpack.c.l.b16 %v183
    %v255 = vunpack.c.l.b16 %v184
    %v256 = vpack.c.b16 %v225, %v224
    %v257 = vpack.c.b16 %v227, %v226
    %v258 = vpack.c.b16 %v229, %v228
    %v259 = vpack.c.b16 %v231, %v230
    %v260 = vpack.c.b16 %v233, %v232
    %v261 = vpack.c.b16 %v235, %v234
    %v262 = vpack.c.b16 %v237, %v236
    %v263 = vpack.c.b16 %v239, %v238
    %v264 = vpack.c.b16 %v241, %v240
    %v265 = vpack.c.b16 %v243, %v242
    %v266 = vpack.c.b16 %v245, %v244
    %v267 = vpack.c.b16 %v247, %v246
    %v268 = vpack.c.b16 %v249, %v248
    %v269 = vpack.c.b16 %v251, %v250
    %v270 = vpack.c.b16 %v253, %v252
    %v271 = vpack.c.b16 %v255, %v254
    %288 = vmatprep.subr.bf16.mxu0 0
    %289 = vmatpush1.bf16.msra.mxu0 %v263
    %290 = vmatprep.subr.bf16.mxu0 0
    %291 = vmatpush1.bf16.msra.mxu0 %v262
    %292 = vmatprep.subr.bf16.mxu0 0
    %293 = vmatpush1.bf16.msra.mxu0 %v261
    %294 = vmatprep.subr.bf16.mxu0 0
    %295 = vmatpush1.bf16.msra.mxu0 %v260
    %296 = vmatprep.subr.bf16.mxu0 0
    %297 = vmatpush1.bf16.msra.mxu0 %v259
    %298 = vmatprep.subr.bf16.mxu0 0
    %299 = vmatpush1.bf16.msra.mxu0 %v258
    %300 = vmatprep.subr.bf16.mxu0 0
    %301 = vmatpush1.bf16.msra.mxu0 %v257
    %302 = vmatprep.subr.bf16.mxu0 0
    %303 = vmatpush1.bf16.msra.mxu0 %v256
    %304 = vmatprep.subr.bf16.mxu0 0
    %305 = vmatpush2.bf16.msra.mxu0 %v271
    %306 = vmatprep.subr.bf16.mxu0 0
    %307 = vmatpush2.bf16.msra.mxu0 %v270
    %308 = vmatprep.subr.bf16.mxu0 0
    %309 = vmatpush2.bf16.msra.mxu0 %v269
    %310 = vmatprep.subr.bf16.mxu0 0
    %311 = vmatpush2.bf16.msra.mxu0 %v268
    %312 = vmatprep.subr.bf16.mxu0 0
    %313 = vmatpush2.bf16.msra.mxu0 %v267
    %314 = vmatprep.subr.bf16.mxu0 0
    %315 = vmatpush2.bf16.msra.mxu0 %v266
    %316 = vmatprep.subr.bf16.mxu0 0
    %317 = vmatpush2.bf16.msra.mxu0 %v265
    %318 = vmatprep.subr.bf16.mxu0 0
    %319 = vmatpush2.bf16.msra.mxu0 %v264
    %320 = vmatprep.mubr.bf16.mxu0 %v152
    %321 = vmatmul.mubr.bf16.gmra.mxu0 %v151
    %v322 = vpop.f32.mrf.mxu0
    %v323 = vadd.f32 %v190, %v322
    %v324 = vpop.f32.mrf.mxu0
    %v325 = vpop.f32.mrf.mxu0
    %v326 = vadd.f32 %v190, %v325
    %v327 = vpop.f32.mrf.mxu0
    %328 = vdwg.mxu0
    %vm329 = vcmp.gt.f32.partialorder %v323, 0.0
    %vm330 = vcmp.gt.f32.partialorder %v326, 0.0
    %v331 = vmul.f32 %v323, 0.01
    %v332 = vmul.f32 %v326, 0.01
    %v333 = vsel %vm329, %v323, %v331
    %v334 = vsel %vm330, %v326, %v332
    %v335 = vpack.c.bf16 %v334, %v333
    %v336 = vld [vmem:[#allocation6] sm:$0xf]
    %v337 = vld [vmem:[#allocation6 + $0x4] sm:$0xf]
    %v338 = vld [vmem:[#allocation6 + $0x8] sm:$0xf]
    %v339 = vld [vmem:[#allocation6 + $0xc] sm:$0xf]
    %v340 = vld [vmem:[#allocation6 + $0x10] sm:$0xf]
    %v341 = vld [vmem:[#allocation6 + $0x14] sm:$0xf]
    %v342 = vld [vmem:[#allocation6 + $0x18] sm:$0xf]
    %v343 = vld [vmem:[#allocation6 + $0x1c] sm:$0xf]
    %v344 = vld [vmem:[#allocation6 + $0x20] sm:$0xf]
    %v345 = vld [vmem:[#allocation6 + $0x24] sm:$0xf]
    %v346 = vld [vmem:[#allocation6 + $0x28] sm:$0xf]
    %v347 = vld [vmem:[#allocation6 + $0x2c] sm:$0xf]
    %v348 = vld [vmem:[#allocation6 + $0x30] sm:$0xf]
    %v349 = vld [vmem:[#allocation6 + $0x34] sm:$0xf]
    %v350 = vld [vmem:[#allocation6 + $0x38] sm:$0xf]
    %v351 = vld [vmem:[#allocation6 + $0x3c] sm:$0xf]
    %v352 = vld [vmem:[%s6] sm:$0x1]
    %v354 = vlaneseq
    %v355 = vshrl.u32 %v354, 7
    %v356 = vsub.s32 0, %v355
    %v357 = vrot.slane %v352, %v356
    %v375 = vunpack.c.l.b16 %v336
    %v376 = vunpack.c.l.b16 %v337
    %v377 = vunpack.c.l.b16 %v338
    %v378 = vunpack.c.l.b16 %v339
    %v379 = vunpack.c.l.b16 %v340
    %v380 = vunpack.c.l.b16 %v341
    %v381 = vunpack.c.l.b16 %v342
    %v382 = vunpack.c.l.b16 %v343
    %v383 = vunpack.c.l.b16 %v344
    %v384 = vunpack.c.l.b16 %v345
    %v385 = vunpack.c.l.b16 %v346
    %v386 = vunpack.c.l.b16 %v347
    %v387 = vunpack.c.l.b16 %v348
    %v388 = vunpack.c.l.b16 %v349
    %v389 = vunpack.c.l.b16 %v350
    %v390 = vunpack.c.l.b16 %v351
    %v391 = vpack.c.b16 %v376, %v375
    %v392 = vpack.c.b16 %v378, %v377
    %v393 = vpack.c.b16 %v380, %v379
    %v394 = vpack.c.b16 %v382, %v381
    %v395 = vpack.c.b16 %v384, %v383
    %v396 = vpack.c.b16 %v386, %v385
    %v397 = vpack.c.b16 %v388, %v387
    %v398 = vpack.c.b16 %v390, %v389
    %407 = vmatprep.subr.bf16.mxu0 0
    %408 = vmatpush1.bf16.msra.mxu0 %v398
    %409 = vmatprep.subr.bf16.mxu0 0
    %410 = vmatpush1.bf16.msra.mxu0 %v397
    %411 = vmatprep.subr.bf16.mxu0 0
    %412 = vmatpush1.bf16.msra.mxu0 %v396
    %413 = vmatprep.subr.bf16.mxu0 0
    %414 = vmatpush1.bf16.msra.mxu0 %v395
    %415 = vmatprep.subr.bf16.mxu0 0
    %416 = vmatpush1.bf16.msra.mxu0 %v394
    %417 = vmatprep.subr.bf16.mxu0 0
    %418 = vmatpush1.bf16.msra.mxu0 %v393
    %419 = vmatprep.subr.bf16.mxu0 0
    %420 = vmatpush1.bf16.msra.mxu0 %v392
    %421 = vmatprep.subr.bf16.mxu0 0
    %422 = vmatpush1.bf16.msra.mxu0 %v391
    %423 = vmatprep.subr.bf16.mxu0 0
    %424 = vmatpush2.bf16.msra.mxu0 0
    %425 = vmatprep.subr.bf16.mxu0 0
    %426 = vmatpush2.bf16.msra.mxu0 0
    %427 = vmatprep.subr.bf16.mxu0 0
    %428 = vmatpush2.bf16.msra.mxu0 0
    %429 = vmatprep.subr.bf16.mxu0 0
    %430 = vmatpush2.bf16.msra.mxu0 0
    %431 = vmatprep.subr.bf16.mxu0 0
    %432 = vmatpush2.bf16.msra.mxu0 0
    %433 = vmatprep.subr.bf16.mxu0 0
    %434 = vmatpush2.bf16.msra.mxu0 0
    %435 = vmatprep.subr.bf16.mxu0 0
    %436 = vmatpush2.bf16.msra.mxu0 0
    %437 = vmatprep.subr.bf16.mxu0 0
    %438 = vmatpush2.bf16.msra.mxu0 0
    %439 = vmatprep.mubr.bf16.mxu0 0
    %440 = vmatmul.mubr.bf16.gmra.mxu0 %v335
    %v441 = vpop.f32.mrf.mxu0
    %v442 = vadd.f32 %v357, %v441
    %v443 = vpop.f32.mrf.mxu0
    %v444 = vpop.f32.mrf.mxu0
    %v445 = vadd.f32 %v357, %v444
    %v446 = vpop.f32.mrf.mxu0
    %447 = vdwg.mxu0
    %vm448 = vcmp.gt.f32.partialorder %v442, 0.0
    %vm449 = vcmp.gt.f32.partialorder %v445, 0.0
    %v450 = vmul.f32 %v442, 0.01
    %v451 = vmul.f32 %v445, 0.01
    %v452 = vsel %vm448, %v442, %v450
    %v453 = vsel %vm449, %v445, %v451
    %v454 = vpack.c.bf16 %v453, %v452
    %v455 = vld [vmem:[%s7] sm:$0xf]
    %456 = vmatprep.subr.bf16.mxu0 0
    %457 = vmatpush1.bf16.xpose.msra.mxu0 0
    %458 = vmatprep.subr.bf16.mxu0 0
    %459 = vmatpush1.bf16.xpose.msra.mxu0 0
    %460 = vmatprep.subr.bf16.mxu0 0
    %461 = vmatpush1.bf16.xpose.msra.mxu0 0
    %462 = vmatprep.subr.bf16.mxu0 0
    %463 = vmatpush1.bf16.xpose.msra.mxu0 0
    %464 = vmatprep.subr.bf16.mxu0 0
    %465 = vmatpush1.bf16.xpose.msra.mxu0 0
    %466 = vmatprep.subr.bf16.mxu0 0
    %467 = vmatpush1.bf16.xpose.msra.mxu0 0
    %468 = vmatprep.subr.bf16.mxu0 0
    %469 = vmatpush1.bf16.xpose.msra.mxu0 0
    %470 = vmatprep.subr.bf16.mxu0 0
    %471 = vmatpush1.bf16.xpose.msra.mxu0 %v454
    %472 = vmatprep.subr.bf16.mxu0 0
    %473 = vmatpush2.bf16.xpose.msra.mxu0 0
    %474 = vmatprep.subr.bf16.mxu0 0
    %475 = vmatpush2.bf16.xpose.msra.mxu0 0
    %476 = vmatprep.subr.bf16.mxu0 0
    %477 = vmatpush2.bf16.xpose.msra.mxu0 0
    %478 = vmatprep.subr.bf16.mxu0 0
    %479 = vmatpush2.bf16.xpose.msra.mxu0 0
    %480 = vmatprep.subr.bf16.mxu0 0
    %481 = vmatpush2.bf16.xpose.msra.mxu0 0
    %482 = vmatprep.subr.bf16.mxu0 0
    %483 = vmatpush2.bf16.xpose.msra.mxu0 0
    %484 = vmatprep.subr.bf16.mxu0 0
    %485 = vmatpush2.bf16.xpose.msra.mxu0 0
    %486 = vmatprep.subr.bf16.mxu0 0
    %487 = vmatpush2.bf16.xpose.msra.mxu0 0
    %488 = vmatprep.mubr.bf16.mxu0 0
    %489 = vmatmul.mubr.bf16.gmra.mxu0 %v455
    %v490 = vpop.f32.mrf.mxu0
    %v491 = vadd.f32 0.0, %v490
    %v492 = vpop.f32.mrf.mxu0
    %v493 = vpop.f32.mrf.mxu0
    %v494 = vpop.f32.mrf.mxu0
    %495 = vdwg.mxu0
    %v496 = vld [vmem:[#allocation2] sm:$0x1]
    %498 = vset.pattern.permute.xlu0 0
    %499 = vperm.xlu0 %498, %v496
    %v500 = vpop.permute.xlu0 %499
    %v502 = vlaneseq
    %v503 = vshrl.u32 %v502, 7
    %v504 = vsub.s32 0, %v503
    %v505 = vrot.slane %v500, %v504
    %v506 = vadd.f32 %v491, %v505
    %vm507 = vcmask 122880
    %508 = vst.msk [vmem:[#allocation8] sm:$0x1] %vm507, %v506
    // Predicated region
    $region46: #{critic_forward.1} parent=1 // pred_check
      _
    $region47: #{critic_forward.1} parent=1 // pred_check_branch
      %510 = sbr.rel (0) target = $region49
    $region48: #{critic_forward.1} parent=1 // pred_region
      %s512 = ssub.s32 16, 16
      %513 = vsyncadd [#allocation5], %s512
      %s515 = sshll.u32 [#allocation8], 4
      %s516 = int_to_ptr.vmem [resolvable:$true] %s515
      %518 = dma.vmem_to_hbm [thread:$0]  %s516, 16, %s9, [#allocation5]
    $region49: #{critic_forward.1} parent=1 // pred_fallthru
      _
    // Predicated region
    $region50: #{critic_forward.1} parent=1 // pred_check
      _
    $region51: #{critic_forward.1} parent=1 // pred_check_branch
      %520 = sbr.rel (0) target = $region53
    $region52: #{critic_forward.1} parent=1 // pred_region
      %521 = dma.done [#allocation5], 16
    $region53: #{critic_forward.1} parent=1 // pred_fallthru
      _
    %522 = vsyncpa [#allocation4], 1
    %523 = vsyncpa [#allocation7], 1
    %524 = vsyncpa [#allocation5], 1

</llo_original>
